<compile_context>
chip_gen: v7x
topology: tpu7x:2x2x1
jax: 0.10.0
libtpu: 0.0.40
codegen_flags: <defaults>
</compile_context>

<pallas_src>
import jax
import jax.numpy as jnp
from jax.experimental import pallas as pl
from jax.experimental.pallas import tpu as pltpu


LANE = 128


def _fused_conv1x1_hardsig_kernel(x_ref, wb_ref, o_ref):
    """Fused dual 1x1-conv + hard-sigmoid, lane-dense layout.

    x_ref  : (2*Cin, Mp)   rows [0,Cin) = x1, rows [Cin,2*Cin) = x2
                           (spatially zero-padded, flattened, lane-padded)
    wb_ref : (Cout, Cin+1) packed folded params: [:, :Cin] = w/6,
                           [:, Cin] = (b+3)/6
    o_ref  : (2*Cout, Mp)  rows [0,Cout) from x1, rows [Cout,2*Cout) from x2
    """
    wb = wb_ref[...]                       # (Cout, Cin+1)
    x = x_ref[...]                         # (2*Cin, Mp)
    cout = wb.shape[0]
    cin = wb.shape[1] - 1
    mp = x.shape[1]

    # Hoist the lane broadcasts once; reuse for both inputs (no CSE otherwise).
    w_cols = [jnp.broadcast_to(wb[:, k:k + 1], (cout, mp)) for k in range(cin)]
    b_bcast = jnp.broadcast_to(wb[:, cin:cin + 1], (cout, mp))

    def conv_hardsig(x_in):                # x_in: (Cin, Mp)
        # 1x1 conv == per-pixel channel contraction; Cin=3 -> VPU mul-adds.
        acc = b_bcast
        for k in range(cin):
            acc = acc + w_cols[k] * x_in[k:k + 1, :]
        # hard-sigmoid with the affine folded into (w', b'):
        #   (conv(x)+3).clamp(0,6)/6  ==  clip(w'x + b', 0, 1)
        return jnp.clip(acc, 0.0, 1.0)

    o_ref[0:cout, :] = conv_hardsig(x[0:cin, :]).astype(o_ref.dtype)
    o_ref[cout:2 * cout, :] = conv_hardsig(x[cin:2 * cin, :]).astype(o_ref.dtype)


def _to_lane_dense_padded(x_nchw, mp):
    """NCHW (N=1) -> (Cin, Mp): spatial zero-pad by 1, flatten, lane-pad to Mp.

    Lane-pad tail columns are zeros here, but the corresponding OUTPUT tail
    columns hold clip(b', 0, 1) (bias), and are sliced off before reshape.
    """
    n, c, h, w = x_nchw.shape
    x = x_nchw.reshape(c, h, w)                       # N=1: pure reshape
    x = jnp.pad(x, ((0, 0), (1, 1), (1, 1)))          # padding=1, k=1 -> (H+2, W+2)
    x = x.reshape(c, (h + 2) * (w + 2)).astype(jnp.float32)
    m = x.shape[1]
    if mp != m:
        x = jnp.pad(x, ((0, 0), (0, mp - m)))
    return x


@jax.jit
def _forward(wb_folded, x1, x2):
    """Functional, jitted forward: pads, one pallas_call, slice+reshape."""
    n, c, h, w = x1.shape
    hp, wp = h + 2, w + 2
    m = hp * wp
    mp = ((m + LANE - 1) // LANE) * LANE
    cout = wb_folded.shape[0]

    x1_2d = _to_lane_dense_padded(x1, mp)             # (Cin, Mp)
    x2_2d = _to_lane_dense_padded(x2, mp)             # (Cin, Mp)
    x_stacked = jnp.concatenate([x1_2d, x2_2d], axis=0)   # (2*Cin, Mp) -> 1 DMA

    out2d = pl.pallas_call(
        _fused_conv1x1_hardsig_kernel,
        out_shape=jax.ShapeDtypeStruct((2 * cout, mp), jnp.float32),
        in_specs=[
            pl.BlockSpec(memory_space=pltpu.MemorySpace.VMEM),
            pl.BlockSpec(memory_space=pltpu.MemorySpace.VMEM),
        ],
        out_specs=pl.BlockSpec(memory_space=pltpu.MemorySpace.VMEM),
    )(x_stacked, wb_folded)

    # rows 0..Cout-1 = hardsigmoid(conv(x1)), rows Cout..2*Cout-1 = from x2;
    # channel-concat is free, only slice off lane-pad tail + reshape to NCHW.
    return out2d[:, :m].reshape(1, 2 * cout, hp, wp)


class Model:
    """JAX/Pallas equivalent of the PyTorch Model."""

    def __init__(self, key):
        kw, kb = jax.random.split(key)
        cin, cout, k = 3, 8, 1
        # deterministic init mimicking nn.Conv2d default (uniform +-1/sqrt(fan_in))
        bound = 1.0 / (cin * k * k) ** 0.5
        self.weight = jax.random.uniform(
            kw, (cout, cin, k, k), minval=-bound, maxval=bound, dtype=jnp.float32)
        self.bias = jax.random.uniform(
            kb, (cout,), minval=-bound, maxval=bound, dtype=jnp.float32)
        # Fold the hard-sigmoid affine into the conv params, pack w'|b' together.
        w_folded = (self.weight.reshape(cout, cin) / 6.0).astype(jnp.float32)
        b_folded = ((self.bias + 3.0) / 6.0).reshape(cout, 1).astype(jnp.float32)
        self.wb_folded = jnp.concatenate([w_folded, b_folded], axis=1)  # (Cout, Cin+1)
        self.cin = cin
        self.cout = cout

    def __call__(self, x1, x2):
        assert x1.shape[0] == 1 and x2.shape[0] == 1, "wrapper assumes batch 1 (as in the spec)"
        assert x1.shape[1] == self.cin and x2.shape[1] == self.cin
        assert x1.shape[2:] == x2.shape[2:], "torch.cat(dim=1) requires equal spatial dims"
        return _forward(self.wb_folded, x1, x2)


# TODO(synk): v7x scaling — if spatial/batch grow, add a parallel grid axis over
# the lane (M) dimension (512–2048 column tiles) so both TensorCores are used.


if __name__ == "__main__":
    key = jax.random.PRNGKey(0)
    k_model, k1, k2 = jax.random.split(key, 3)

    model = Model(k_model)

    # Small inputs consistent with the module (equal spatial so cat(dim=1) works).
    x1 = jax.random.normal(k1, (1, 3, 16, 16), dtype=jnp.float32)
    x2 = jax.random.normal(k2, (1, 3, 16, 16), dtype=jnp.float32)

    out = jax.block_until_ready(model(x1, x2))
    assert out.shape == (1, 16, 18, 18), out.shape

    # Pure-JAX reference (unfolded math) to validate the kernel result.
    def _ref_one(x):
        w = model.weight.reshape(8, 3)
        xp = jnp.pad(x, ((0, 0), (0, 0), (1, 1), (1, 1)))
        y = jnp.einsum("oc,nchw->nohw", w, xp) + model.bias.reshape(1, 8, 1, 1)
        return jnp.clip(y + 3.0, 0.0, 6.0) / 6.0

    ref = jnp.concatenate([_ref_one(x1), _ref_one(x2)], axis=1)
    max_err = float(jnp.max(jnp.abs(out - ref)))
    assert max_err < 1e-5, max_err
    assert bool(jnp.all(out >= 0.0)) and bool(jnp.all(out <= 1.0))

    print("KERNEL_OK")
</pallas_src>

<mosaic_0001>
module attributes {stable_mosaic.version = 11 : i64} {
  func.func @_fused_conv1x1_hardsig_kernel(%arg0: memref<6x384xf32, #tpu.memory_space<vmem>>, %arg1: memref<8x4xf32, #tpu.memory_space<vmem>>, %arg2: memref<16x384xf32, #tpu.memory_space<vmem>>) attributes {dimension_semantics = [], scalar_prefetch = 0 : i64, scratch_operands = 0 : i64, tpu.core_type = #tpu.core_type<tc>} {
    %c0 = arith.constant 0 : index
    %c0_0 = arith.constant 0 : index
    %0 = vector.load %arg1[%c0, %c0_0] : memref<8x4xf32, #tpu.memory_space<vmem>>, vector<8x4xf32>
    %c0_1 = arith.constant 0 : index
    %c0_2 = arith.constant 0 : index
    %1 = vector.load %arg0[%c0_1, %c0_2] : memref<6x384xf32, #tpu.memory_space<vmem>>, vector<6x384xf32>
    %2 = vector.extract_strided_slice %0 {offsets = [0, 0], sizes = [8, 1], strides = [1, 1]} : vector<8x4xf32> to vector<8x1xf32>
    %3 = vector.shape_cast %2 : vector<8x1xf32> to vector<8x1xf32>
    %4 = vector.broadcast %3 : vector<8x1xf32> to vector<8x384xf32>
    %5 = vector.extract_strided_slice %0 {offsets = [0, 1], sizes = [8, 1], strides = [1, 1]} : vector<8x4xf32> to vector<8x1xf32>
    %6 = vector.shape_cast %5 : vector<8x1xf32> to vector<8x1xf32>
    %7 = vector.broadcast %6 : vector<8x1xf32> to vector<8x384xf32>
    %8 = vector.extract_strided_slice %0 {offsets = [0, 2], sizes = [8, 1], strides = [1, 1]} : vector<8x4xf32> to vector<8x1xf32>
    %9 = vector.shape_cast %8 : vector<8x1xf32> to vector<8x1xf32>
    %10 = vector.broadcast %9 : vector<8x1xf32> to vector<8x384xf32>
    %11 = vector.extract_strided_slice %0 {offsets = [0, 3], sizes = [8, 1], strides = [1, 1]} : vector<8x4xf32> to vector<8x1xf32>
    %12 = vector.shape_cast %11 : vector<8x1xf32> to vector<8x1xf32>
    %13 = vector.broadcast %12 : vector<8x1xf32> to vector<8x384xf32>
    %14 = vector.extract_strided_slice %1 {offsets = [0, 0], sizes = [3, 384], strides = [1, 1]} : vector<6x384xf32> to vector<3x384xf32>
    %15 = vector.extract_strided_slice %14 {offsets = [0, 0], sizes = [1, 384], strides = [1, 1]} : vector<3x384xf32> to vector<1x384xf32>
    %16 = vector.broadcast %15 : vector<1x384xf32> to vector<8x384xf32>
    %17 = arith.mulf %4, %16 : vector<8x384xf32>
    %18 = arith.addf %13, %17 : vector<8x384xf32>
    %19 = vector.extract_strided_slice %14 {offsets = [1, 0], sizes = [1, 384], strides = [1, 1]} : vector<3x384xf32> to vector<1x384xf32>
    %20 = vector.broadcast %19 : vector<1x384xf32> to vector<8x384xf32>
    %21 = arith.mulf %7, %20 : vector<8x384xf32>
    %22 = arith.addf %18, %21 : vector<8x384xf32>
    %23 = vector.extract_strided_slice %14 {offsets = [2, 0], sizes = [1, 384], strides = [1, 1]} : vector<3x384xf32> to vector<1x384xf32>
    %24 = vector.broadcast %23 : vector<1x384xf32> to vector<8x384xf32>
    %25 = arith.mulf %10, %24 : vector<8x384xf32>
    %26 = arith.addf %22, %25 : vector<8x384xf32>
    %cst = arith.constant 0.000000e+00 : f32
    %cst_3 = arith.constant 1.000000e+00 : f32
    %27 = vector.broadcast %cst : f32 to vector<8x384xf32>
    %28 = arith.maximumf %27, %26 : vector<8x384xf32>
    %29 = vector.broadcast %cst_3 : f32 to vector<8x384xf32>
    %30 = arith.minimumf %29, %28 : vector<8x384xf32>
    %c0_4 = arith.constant 0 : index
    %c0_5 = arith.constant 0 : index
    %31 = vector.load %arg2[%c0_4, %c0_5] : memref<16x384xf32, #tpu.memory_space<vmem>>, vector<8x384xf32>
    tpu.vector_store %arg2[%c0_4, %c0_5], %30 {strides = array<i32>} : memref<16x384xf32, #tpu.memory_space<vmem>>, vector<8x384xf32>,
    %32 = vector.extract_strided_slice %1 {offsets = [3, 0], sizes = [3, 384], strides = [1, 1]} : vector<6x384xf32> to vector<3x384xf32>
    %33 = vector.extract_strided_slice %32 {offsets = [0, 0], sizes = [1, 384], strides = [1, 1]} : vector<3x384xf32> to vector<1x384xf32>
    %34 = vector.broadcast %33 : vector<1x384xf32> to vector<8x384xf32>
    %35 = arith.mulf %4, %34 : vector<8x384xf32>
    %36 = arith.addf %13, %35 : vector<8x384xf32>
    %37 = vector.extract_strided_slice %32 {offsets = [1, 0], sizes = [1, 384], strides = [1, 1]} : vector<3x384xf32> to vector<1x384xf32>
    %38 = vector.broadcast %37 : vector<1x384xf32> to vector<8x384xf32>
    %39 = arith.mulf %7, %38 : vector<8x384xf32>
    %40 = arith.addf %36, %39 : vector<8x384xf32>
    %41 = vector.extract_strided_slice %32 {offsets = [2, 0], sizes = [1, 384], strides = [1, 1]} : vector<3x384xf32> to vector<1x384xf32>
    %42 = vector.broadcast %41 : vector<1x384xf32> to vector<8x384xf32>
    %43 = arith.mulf %10, %42 : vector<8x384xf32>
    %44 = arith.addf %40, %43 : vector<8x384xf32>
    %cst_6 = arith.constant 0.000000e+00 : f32
    %cst_7 = arith.constant 1.000000e+00 : f32
    %45 = vector.broadcast %cst_6 : f32 to vector<8x384xf32>
    %46 = arith.maximumf %45, %44 : vector<8x384xf32>
    %47 = vector.broadcast %cst_7 : f32 to vector<8x384xf32>
    %48 = arith.minimumf %47, %46 : vector<8x384xf32>
    %c8 = arith.constant 8 : index
    %c0_8 = arith.constant 0 : index
    %49 = vector.load %arg2[%c8, %c0_8] : memref<16x384xf32, #tpu.memory_space<vmem>>, vector<8x384xf32>
    tpu.vector_store %arg2[%c8, %c0_8], %48 {strides = array<i32>} : memref<16x384xf32, #tpu.memory_space<vmem>>, vector<8x384xf32>,
    return
  }
}

</mosaic_0001>

<llo_original>
// kernel: _forward.1
$region0: #{_forward.1}
  #allocation0 [shape = 'u32[]', space=smem, size = 0x4, offset = 0x4, fixed_abs, tag = 'smem constant byte address 0x4 - core index']
  #allocation1 [shape = 'u32[144,128]{1,0:T(1,128)}', space=vmem, size = 0x12000, scoped, tag = 'internal scratch']
  %s0 = inlined_call_operand.vmem [shape: f32[6,384], index: 0, kind: input, shape index: {}]
  %s1 = inlined_call_operand.vmem [shape: f32[8,4], index: 1, kind: input, shape index: {}]
  %s2 = inlined_call_operand.vmem [shape: f32[16,384], index: 2, kind: output, shape index: {}]
  %s3 = sld [smem:[#allocation0]]
  $region18: #{_forward.1} parent=0
    _
  %s5 = ssub.s32 1, %s3
  %s6 = scalar_select 0, %s5, %s3
  // Predicated region
  $region2: #{_forward.1} parent=0 // pred_check
    _
  $region3: #{_forward.1} parent=0 // pred_check_branch
    %8 = sbr.rel (0) target = $region5
  $region4: #{_forward.1} parent=0 // pred_region
    _
  $region5: #{_forward.1} parent=0 // pred_fallthru
    _
  // Predicated region
  $region6: #{_forward.1} parent=0 // pred_check
    _
  $region7: #{_forward.1} parent=0 // pred_check_branch
    %10 = sbr.rel (0) target = $region9
  $region8: #{_forward.1} parent=0 // pred_region
    _
  $region9: #{_forward.1} parent=0 // pred_fallthru
    _
  %v11 = vld [vmem:[%s1] sm:$0xff]
  %v12 = vld [vmem:[%s0] sm:$0x3f]
  %v13 = vld [vmem:[%s0 + $0x8] sm:$0x3f]
  %v14 = vld [vmem:[%s0 + $0x10] sm:$0x3f]
  %16 = vset.pattern.permute.xlu0 0
  %17 = vperm.xlu0 %16, %v11
  %v18 = vpop.permute.xlu0 %17
  %20 = vset.pattern.permute.xlu0 1
  %21 = vperm.xlu0 %20, %v11
  %v22 = vpop.permute.xlu0 %21
  %24 = vset.pattern.permute.xlu0 2
  %25 = vperm.xlu0 %24, %v11
  %v26 = vpop.permute.xlu0 %25
  %28 = vset.pattern.permute.xlu0 3
  %29 = vperm.xlu0 %28, %v11
  %v30 = vpop.permute.xlu0 %29
  %v32 = vlaneseq
  %v33 = vshrl.u32 %v32, 7
  %v34 = vsub.s32 0, %v33
  %v35 = vrot.slane %v12, %v34
  %v36 = vlaneseq
  %v37 = vshrl.u32 %v36, 7
  %v38 = vsub.s32 0, %v37
  %v39 = vrot.slane %v13, %v38
  %v40 = vlaneseq
  %v41 = vshrl.u32 %v40, 7
  %v42 = vsub.s32 0, %v41
  %v43 = vrot.slane %v14, %v42
  %v44 = vmul.f32 %v18, %v35
  %v45 = vmul.f32 %v18, %v39
  %v46 = vmul.f32 %v18, %v43
  %v47 = vadd.f32 %v30, %v44
  %v48 = vadd.f32 %v30, %v45
  %v49 = vadd.f32 %v30, %v46
  %v50 = vlaneseq
  %v51 = vshrl.u32 %v50, 7
  %v52 = vsub.s32 1, %v51
  %v53 = vrot.slane %v12, %v52
  %v54 = vlaneseq
  %v55 = vshrl.u32 %v54, 7
  %v56 = vsub.s32 1, %v55
  %v57 = vrot.slane %v13, %v56
  %v58 = vlaneseq
  %v59 = vshrl.u32 %v58, 7
  %v60 = vsub.s32 1, %v59
  %v61 = vrot.slane %v14, %v60
  %v62 = vmul.f32 %v22, %v53
  %v63 = vmul.f32 %v22, %v57
  %v64 = vmul.f32 %v22, %v61
  %v65 = vadd.f32 %v47, %v62
  %v66 = vadd.f32 %v48, %v63
  %v67 = vadd.f32 %v49, %v64
  %v68 = vlaneseq
  %v69 = vshrl.u32 %v68, 7
  %v70 = vsub.s32 2, %v69
  %v71 = vrot.slane %v12, %v70
  %v72 = vlaneseq
  %v73 = vshrl.u32 %v72, 7
  %v74 = vsub.s32 2, %v73
  %v75 = vrot.slane %v13, %v74
  %v76 = vlaneseq
  %v77 = vshrl.u32 %v76, 7
  %v78 = vsub.s32 2, %v77
  %v79 = vrot.slane %v14, %v78
  %v80 = vmul.f32 %v26, %v71
  %v81 = vmul.f32 %v26, %v75
  %v82 = vmul.f32 %v26, %v79
  %v83 = vadd.f32 %v65, %v80
  %v84 = vadd.f32 %v66, %v81
  %v85 = vadd.f32 %v67, %v82
  %v86 = vmax.f32 %v83, 0.0
  %v87 = vmax.f32 %v84, 0.0
  %v88 = vmax.f32 %v85, 0.0
  %v89 = vmin.f32 %v86, 1.0
  %v90 = vmin.f32 %v87, 1.0
  %v91 = vmin.f32 %v88, 1.0
  %92 = vst [vmem:[%s2] sm:$0xff] %v89
  %93 = vst [vmem:[%s2 + $0x8] sm:$0xff] %v90
  %94 = vst [vmem:[%s2 + $0x10] sm:$0xff] %v91
  %v95 = vlaneseq
  %v96 = vshrl.u32 %v95, 7
  %v97 = vsub.s32 3, %v96
  %v98 = vrot.slane %v12, %v97
  %v99 = vlaneseq
  %v100 = vshrl.u32 %v99, 7
  %v101 = vsub.s32 3, %v100
  %v102 = vrot.slane %v13, %v101
  %v103 = vlaneseq
  %v104 = vshrl.u32 %v103, 7
  %v105 = vsub.s32 3, %v104
  %v106 = vrot.slane %v14, %v105
  %v107 = vmul.f32 %v18, %v98
  %v108 = vmul.f32 %v18, %v102
  %v109 = vmul.f32 %v18, %v106
  %v110 = vadd.f32 %v30, %v107
  %v111 = vadd.f32 %v30, %v108
  %v112 = vadd.f32 %v30, %v109
  %v113 = vlaneseq
  %v114 = vshrl.u32 %v113, 7
  %v115 = vsub.s32 4, %v114
  %v116 = vrot.slane %v12, %v115
  %v117 = vlaneseq
  %v118 = vshrl.u32 %v117, 7
  %v119 = vsub.s32 4, %v118
  %v120 = vrot.slane %v13, %v119
  %v121 = vlaneseq
  %v122 = vshrl.u32 %v121, 7
  %v123 = vsub.s32 4, %v122
  %v124 = vrot.slane %v14, %v123
  %v125 = vmul.f32 %v22, %v116
  %v126 = vmul.f32 %v22, %v120
  %v127 = vmul.f32 %v22, %v124
  %v128 = vadd.f32 %v110, %v125
  %v129 = vadd.f32 %v111, %v126
  %v130 = vadd.f32 %v112, %v127
  %v131 = vlaneseq
  %v132 = vshrl.u32 %v131, 7
  %v133 = vsub.s32 5, %v132
  %v134 = vrot.slane %v12, %v133
  %v135 = vlaneseq
  %v136 = vshrl.u32 %v135, 7
  %v137 = vsub.s32 5, %v136
  %v138 = vrot.slane %v13, %v137
  %v139 = vlaneseq
  %v140 = vshrl.u32 %v139, 7
  %v141 = vsub.s32 5, %v140
  %v142 = vrot.slane %v14, %v141
  %v143 = vmul.f32 %v26, %v134
  %v144 = vmul.f32 %v26, %v138
  %v145 = vmul.f32 %v26, %v142
  %v146 = vadd.f32 %v128, %v143
  %v147 = vadd.f32 %v129, %v144
  %v148 = vadd.f32 %v130, %v145
  %v149 = vmax.f32 %v146, 0.0
  %v150 = vmax.f32 %v147, 0.0
  %v151 = vmax.f32 %v148, 0.0
  %v152 = vmin.f32 %v149, 1.0
  %v153 = vmin.f32 %v150, 1.0
  %v154 = vmin.f32 %v151, 1.0
  %155 = vst [vmem:[%s2 + $0x18] sm:$0xff] %v152
  %156 = vst [vmem:[%s2 + $0x20] sm:$0xff] %v153
  %157 = vst [vmem:[%s2 + $0x28] sm:$0xff] %v154
  // Predicated region
  $region10: #{_forward.1} parent=0 // pred_check
    _
  $region11: #{_forward.1} parent=0 // pred_check_branch
    %159 = sbr.rel (0) target = $region13
  $region12: #{_forward.1} parent=0 // pred_region
    _
  $region13: #{_forward.1} parent=0 // pred_fallthru
    _
  // Predicated region
  $region14: #{_forward.1} parent=0 // pred_check
    _
  $region15: #{_forward.1} parent=0 // pred_check_branch
    %161 = sbr.rel (0) target = $region17
  $region16: #{_forward.1} parent=0 // pred_region
    _
  $region17: #{_forward.1} parent=0 // pred_fallthru
    _

</llo_original>
